<compile_context>
chip_gen: v7x
topology: tpu7x:2x2x1
jax: 0.10.0
libtpu: 0.0.40
codegen_flags: <defaults>
</compile_context>

<pallas_src>
import math
import functools

import jax
import jax.numpy as jnp
from jax.experimental import pallas as pl
from jax.experimental.pallas import tpu as pltpu

LANE = 128      # vreg lane width
SUBLANE = 8     # vreg sublane count


def _round_up(x, m):
    return ((x + m - 1) // m) * m


# ----------------------------------------------------------------------------
# Kernel: in-kernel sinusoidal embedding + Linear -> SiLU -> Linear.
#
#   angles = t * freqs + phase          # (TB, kp); lanes [half,2*half) carry
#                                       #   the +pi/2 phase -> sin == cos
#   emb    = sin(angles)                # one EUP pass, zero in padded lanes
#   h      = emb @ W1_packed + b1       # single MXU matmul (sin & cos fused)
#   h      = SiLU(h)  (tanh form, f32)
#   out    = h @ W2 + b2
# ----------------------------------------------------------------------------
def time_embedding_kernel(t_ref,      # VMEM (TB, 1)        f32 timesteps
                          freqs_ref,  # VMEM (1, kp)        f32 [f, f, 0pad]
                          phase_ref,  # VMEM (1, kp)        f32 [0, pi/2, 0pad]
                          w1_ref,     # VMEM (kp, dim_p)    [W1 sin rows; cos rows]
                          b1_ref,     # VMEM (1, dim_p)     f32
                          w2_ref,     # VMEM (dim_p, dim_p)
                          b2_ref,     # VMEM (1, dim_p)     f32
                          out_ref):   # VMEM (TB, dim_p)    f32
    ang = t_ref[...] * freqs_ref[...] + phase_ref[...]          # (TB, kp)
    emb = jnp.sin(ang).astype(w1_ref.dtype)                     # padded lanes -> 0

    h = jnp.dot(emb, w1_ref[...],
                preferred_element_type=jnp.float32) + b1_ref[...]
    # SiLU via a single EUP transcendental: x*sigmoid(x) == 0.5*x*(1+tanh(x/2)).
    h = 0.5 * h * (1.0 + jnp.tanh(0.5 * h))

    out = jnp.dot(h.astype(w2_ref.dtype), w2_ref[...],
                  preferred_element_type=jnp.float32) + b2_ref[...]
    out_ref[...] = out.astype(out_ref.dtype)


# ----------------------------------------------------------------------------
# One-time host-side parameter packing (module init, NOT per forward call).
# ----------------------------------------------------------------------------
def pack_time_embedding_params(w1, b1, w2, b2, *, d_model, dim,
                               mxu_dtype=jnp.float32):
    """w1: (d_model, dim), w2: (dim, dim) stored (in, out); b1/b2: (dim,).

    Returns lane-dense, zero-padded tensors ready for the kernel.  Weights may
    be cast to bf16 (mxu_dtype) for v6e/v7x MXU rate; biases stay f32.
    """
    assert d_model % 2 == 0
    half = d_model // 2
    kp = _round_up(2 * half, SUBLANE)        # K only needs sublane alignment
    dim_p = _round_up(dim, LANE)             # lane-dense hidden / output width

    # f_k = exp(-(2k / d_model) * ln(10000)), duplicated for the cos half.
    freqs = jnp.exp(-(jnp.arange(half, dtype=jnp.float32) * 2.0 / d_model)
                    * math.log(10000.0))
    freqs_row = (jnp.zeros((1, kp), jnp.float32)
                 .at[0, :half].set(freqs)
                 .at[0, half:2 * half].set(freqs))
    # sin(x + pi/2) == cos(x): folds the interleaved sin/cos table into one sin.
    phase_row = jnp.zeros((1, kp), jnp.float32).at[0, half:2 * half].set(0.5 * math.pi)

    # Stack W1's sin rows (even) over its cos rows (odd); zero-pad everything.
    w1_packed = (jnp.zeros((kp, dim_p), jnp.float32)
                 .at[:half, :dim].set(w1[0::2, :])
                 .at[half:2 * half, :dim].set(w1[1::2, :]))
    w2_packed = jnp.zeros((dim_p, dim_p), jnp.float32).at[:dim, :dim].set(w2)
    b1_row = jnp.zeros((1, dim_p), jnp.float32).at[0, :dim].set(b1.reshape(-1))
    b2_row = jnp.zeros((1, dim_p), jnp.float32).at[0, :dim].set(b2.reshape(-1))

    return dict(freqs=freqs_row, phase=phase_row,
                w1=w1_packed.astype(mxu_dtype), b1=b1_row,
                w2=w2_packed.astype(mxu_dtype), b2=b2_row)


def _choose_batch_tile(B):
    """>=2 grid steps when possible (v7x megacore), <=256 rows, minimal padding."""
    if B <= SUBLANE:
        return _round_up(max(B, 1), SUBLANE)
    n_tiles = max(2, pl.cdiv(B, 256))
    return _round_up(pl.cdiv(B, n_tiles), SUBLANE)


# ----------------------------------------------------------------------------
# Jitted forward: only per-call work is the (B,1) timestep column.
# ----------------------------------------------------------------------------
@functools.partial(jax.jit, static_argnames=("T", "dim"))
def time_embedding_forward(t, freqs, phase, w1, b1, w2, b2, *, T, dim):
    B = t.shape[0]
    kp = freqs.shape[1]
    dim_p = w2.shape[1]

    TB = _choose_batch_tile(B)
    B_pad = _round_up(B, TB)

    # Clamp timesteps (no runtime bounds checks on TPU); f32 column, zero-padded.
    t_f = jnp.clip(t.astype(jnp.int32), 0, T - 1).astype(jnp.float32)
    t_col = jnp.zeros((B_pad, 1), jnp.float32).at[:B, 0].set(t_f)

    grid_spec = pltpu.PrefetchScalarGridSpec(
        num_scalar_prefetch=0,
        grid=(B_pad // TB,),
        in_specs=[
            pl.BlockSpec((TB, 1), lambda i: (i, 0)),                 # timesteps
            pl.BlockSpec((1, kp), lambda i: (0, 0),
                         pipeline_mode=pl.Buffered(1)),              # freqs
            pl.BlockSpec((1, kp), lambda i: (0, 0),
                         pipeline_mode=pl.Buffered(1)),              # phase
            pl.BlockSpec((kp, dim_p), lambda i: (0, 0),
                         pipeline_mode=pl.Buffered(1)),              # W1 packed
            pl.BlockSpec((1, dim_p), lambda i: (0, 0),
                         pipeline_mode=pl.Buffered(1)),              # b1
            pl.BlockSpec((dim_p, dim_p), lambda i: (0, 0),
                         pipeline_mode=pl.Buffered(1)),              # W2
            pl.BlockSpec((1, dim_p), lambda i: (0, 0),
                         pipeline_mode=pl.Buffered(1)),              # b2
        ],
        out_specs=pl.BlockSpec((TB, dim_p), lambda i: (i, 0)),
    )

    # VMEM budget: double-buffered t/out, single-buffered constants, headroom
    # for in-kernel f32 intermediates.  Only raised above the default if needed.
    w_bytes = jnp.dtype(w1.dtype).itemsize
    vmem_est = (2 * TB * 1 * 4
                + 2 * TB * dim_p * 4
                + (2 * kp + 2 * dim_p) * 4
                + (kp * dim_p + dim_p * dim_p) * w_bytes
                + 4 * TB * max(kp, dim_p) * 4)
    vmem_limit = int(min(max(2 * vmem_est, 32 << 20), 128 << 20))
    # TODO(synk): for very large dim (dim_p^2 weights approaching VMEM), add an
    # output-column grid axis tiling W2 instead of holding the full block.

    out_pad = pl.pallas_call(
        time_embedding_kernel,
        out_shape=jax.ShapeDtypeStruct((B_pad, dim_p), jnp.float32),
        grid_spec=grid_spec,
        compiler_params=pltpu.CompilerParams(
            # Independent batch tiles -> sharded across TCs on v7x megacore.
            dimension_semantics=("parallel",),
            vmem_limit_bytes=vmem_limit),
    )(t_col, freqs, phase, w1, b1, w2, b2)

    if B_pad == B and dim_p == dim:
        return out_pad                        # no post-kernel slice/copy
    return out_pad[:B, :dim]


# ----------------------------------------------------------------------------
# Deterministic parameter construction + pure-JAX reference
# ----------------------------------------------------------------------------
def make_sinusoidal_table(T, d_model):
    assert d_model % 2 == 0
    freqs = jnp.exp(-(jnp.arange(0, d_model, 2, dtype=jnp.float32)
                      / d_model * math.log(10000.0)))          # (d_model//2,)
    pos = jnp.arange(T, dtype=jnp.float32)                     # (T,)
    ang = pos[:, None] * freqs[None, :]                        # (T, d_model//2)
    emb = jnp.stack([jnp.sin(ang), jnp.cos(ang)], axis=-1)     # (T, d//2, 2)
    return emb.reshape(T, d_model)                             # interleaved


def xavier_uniform(key, fan_in, fan_out):
    bound = math.sqrt(6.0 / (fan_in + fan_out))
    return jax.random.uniform(key, (fan_in, fan_out), jnp.float32,
                              minval=-bound, maxval=bound)


def reference_forward(t, table, w1, b1, w2, b2):
    x = table[t]
    h = x @ w1 + b1
    h = h * jax.nn.sigmoid(h)
    return h @ w2 + b2


if __name__ == "__main__":
    # Small shapes consistent with the module.
    T, d_model, dim = 16, 32, 64

    key = jax.random.PRNGKey(0)
    k_t1, k_t2, k_w1, k_w2 = jax.random.split(key, 4)

    w1 = xavier_uniform(k_w1, d_model, dim)
    b1 = jnp.zeros((dim,), jnp.float32)
    w2 = xavier_uniform(k_w2, dim, dim)
    b2 = jnp.zeros((dim,), jnp.float32)
    table = make_sinusoidal_table(T, d_model)

    # --- f32 weight path (bit-accuracy check vs. reference) -----------------
    B1 = 8
    t1 = jax.random.randint(k_t1, (B1,), 0, T, dtype=jnp.int32)
    params_f32 = pack_time_embedding_params(w1, b1, w2, b2,
                                            d_model=d_model, dim=dim,
                                            mxu_dtype=jnp.float32)
    out1 = time_embedding_forward(t1, params_f32["freqs"], params_f32["phase"],
                                  params_f32["w1"], params_f32["b1"],
                                  params_f32["w2"], params_f32["b2"],
                                  T=T, dim=dim)
    out1 = jax.block_until_ready(out1)
    ref1 = reference_forward(t1, table, w1, b1, w2, b2)
    assert out1.shape == (B1, dim)
    assert jnp.allclose(out1, ref1, atol=1e-4, rtol=1e-4), \
        float(jnp.max(jnp.abs(out1 - ref1)))

    # --- bf16 weight path, multi-step grid (v6e/v7x MXU-rate configuration) --
    B2 = 20                                   # -> 2 grid steps (TB=16)
    t2 = jax.random.randint(k_t2, (B2,), 0, T, dtype=jnp.int32)
    params_bf16 = pack_time_embedding_params(w1, b1, w2, b2,
                                             d_model=d_model, dim=dim,
                                             mxu_dtype=jnp.bfloat16)
    out2 = time_embedding_forward(t2, params_bf16["freqs"], params_bf16["phase"],
                                  params_bf16["w1"], params_bf16["b1"],
                                  params_bf16["w2"], params_bf16["b2"],
                                  T=T, dim=dim)
    out2 = jax.block_until_ready(out2)
    ref2 = reference_forward(t2, table, w1, b1, w2, b2)
    assert out2.shape == (B2, dim)
    assert jnp.allclose(out2, ref2, atol=5e-2, rtol=5e-2), \
        float(jnp.max(jnp.abs(out2 - ref2)))

    print("KERNEL_OK")
</pallas_src>

<mosaic_0001>
module attributes {stable_mosaic.version = 11 : i64} {
  func.func @time_embedding_kernel(%arg0: i32, %arg1: memref<8x1xf32, #tpu.memory_space<vmem>>, %arg2: memref<1x32xf32, #tpu.memory_space<vmem>>, %arg3: memref<1x32xf32, #tpu.memory_space<vmem>>, %arg4: memref<32x128xf32, #tpu.memory_space<vmem>>, %arg5: memref<1x128xf32, #tpu.memory_space<vmem>>, %arg6: memref<128x128xf32, #tpu.memory_space<vmem>>, %arg7: memref<1x128xf32, #tpu.memory_space<vmem>>, %arg8: memref<8x128xf32, #tpu.memory_space<vmem>>) attributes {dimension_semantics = [#tpu.dimension_semantics<parallel>], iteration_bounds = array<i64: 1>, scalar_prefetch = 0 : i64, scratch_operands = 0 : i64, tpu.core_type = #tpu.core_type<tc>, window_params = [{transform_indices = @transform_0, window_bounds = array<i64: 8, 1>}, {pipeline_mode = #tpu.pipeline_mode<synchronous>, transform_indices = @transform_1, window_bounds = array<i64: 1, 32>}, {pipeline_mode = #tpu.pipeline_mode<synchronous>, transform_indices = @transform_2, window_bounds = array<i64: 1, 32>}, {pipeline_mode = #tpu.pipeline_mode<synchronous>, transform_indices = @transform_3, window_bounds = array<i64: 32, 128>}, {pipeline_mode = #tpu.pipeline_mode<synchronous>, transform_indices = @transform_4, window_bounds = array<i64: 1, 128>}, {pipeline_mode = #tpu.pipeline_mode<synchronous>, transform_indices = @transform_5, window_bounds = array<i64: 128, 128>}, {pipeline_mode = #tpu.pipeline_mode<synchronous>, transform_indices = @transform_6, window_bounds = array<i64: 1, 128>}, {transform_indices = @transform_7, window_bounds = array<i64: 8, 128>}]} {
    %c0 = arith.constant 0 : index
    %c0_0 = arith.constant 0 : index
    %0 = vector.load %arg1[%c0, %c0_0] : memref<8x1xf32, #tpu.memory_space<vmem>>, vector<8x1xf32>
    %c0_1 = arith.constant 0 : index
    %c0_2 = arith.constant 0 : index
    %1 = vector.load %arg2[%c0_1, %c0_2] : memref<1x32xf32, #tpu.memory_space<vmem>>, vector<1x32xf32>
    %2 = vector.broadcast %0 : vector<8x1xf32> to vector<8x32xf32>
    %3 = vector.broadcast %1 : vector<1x32xf32> to vector<8x32xf32>
    %4 = arith.mulf %2, %3 : vector<8x32xf32>
    %c0_3 = arith.constant 0 : index
    %c0_4 = arith.constant 0 : index
    %5 = vector.load %arg3[%c0_3, %c0_4] : memref<1x32xf32, #tpu.memory_space<vmem>>, vector<1x32xf32>
    %6 = vector.broadcast %5 : vector<1x32xf32> to vector<8x32xf32>
    %7 = arith.addf %4, %6 : vector<8x32xf32>
    %8 = math.sin %7 : vector<8x32xf32>
    %c0_5 = arith.constant 0 : index
    %c0_6 = arith.constant 0 : index
    %9 = vector.load %arg4[%c0_5, %c0_6] : memref<32x128xf32, #tpu.memory_space<vmem>>, vector<32x128xf32>
    %cst = arith.constant dense<0.000000e+00> : vector<8x128xf32>
    %10 = tpu.matmul %8, %9, %cst {dimension_numbers = #tpu.dot_dimension_numbers<[1], [0], [0], [1], [0, 0, 1, 1], [], []>} : vector<8x32xf32>, vector<32x128xf32>, vector<8x128xf32> -> vector<8x128xf32>
    %c0_7 = arith.constant 0 : index
    %c0_8 = arith.constant 0 : index
    %11 = vector.load %arg5[%c0_7, %c0_8] : memref<1x128xf32, #tpu.memory_space<vmem>>, vector<1x128xf32>
    %12 = vector.broadcast %11 : vector<1x128xf32> to vector<8x128xf32>
    %13 = arith.addf %10, %12 : vector<8x128xf32>
    %cst_9 = arith.constant 5.000000e-01 : f32
    %14 = vector.broadcast %cst_9 : f32 to vector<8x128xf32>
    %15 = arith.mulf %14, %13 : vector<8x128xf32>
    %cst_10 = arith.constant 5.000000e-01 : f32
    %16 = vector.broadcast %cst_10 : f32 to vector<8x128xf32>
    %17 = arith.mulf %16, %13 : vector<8x128xf32>
    %18 = math.tanh %17 : vector<8x128xf32>
    %cst_11 = arith.constant 1.000000e+00 : f32
    %19 = vector.broadcast %cst_11 : f32 to vector<8x128xf32>
    %20 = arith.addf %19, %18 : vector<8x128xf32>
    %21 = arith.mulf %15, %20 : vector<8x128xf32>
    %c0_12 = arith.constant 0 : index
    %c0_13 = arith.constant 0 : index
    %22 = vector.load %arg6[%c0_12, %c0_13] : memref<128x128xf32, #tpu.memory_space<vmem>>, vector<128x128xf32>
    %cst_14 = arith.constant dense<0.000000e+00> : vector<8x128xf32>
    %23 = tpu.matmul %21, %22, %cst_14 {dimension_numbers = #tpu.dot_dimension_numbers<[1], [0], [0], [1], [0, 0, 1, 1], [], []>} : vector<8x128xf32>, vector<128x128xf32>, vector<8x128xf32> -> vector<8x128xf32>
    %c0_15 = arith.constant 0 : index
    %c0_16 = arith.constant 0 : index
    %24 = vector.load %arg7[%c0_15, %c0_16] : memref<1x128xf32, #tpu.memory_space<vmem>>, vector<1x128xf32>
    %25 = vector.broadcast %24 : vector<1x128xf32> to vector<8x128xf32>
    %26 = arith.addf %23, %25 : vector<8x128xf32>
    %c0_17 = arith.constant 0 : index
    %c0_18 = arith.constant 0 : index
    %27 = vector.load %arg8[%c0_17, %c0_18] : memref<8x128xf32, #tpu.memory_space<vmem>>, vector<8x128xf32>
    tpu.vector_store %arg8[%c0_17, %c0_18], %26 {strides = array<i32>} : memref<8x128xf32, #tpu.memory_space<vmem>>, vector<8x128xf32>,
    return
  }
  func.func @transform_0(%arg0: i32) -> (i32, i32) {
    %c0_i32 = arith.constant 0 : i32
    %c0_i32_0 = arith.constant 0 : i32
    return %arg0, %c0_i32 : i32, i32
  }
  func.func @transform_1(%arg0: i32) -> (i32, i32) {
    %c0_i32 = arith.constant 0 : i32
    %c0_i32_0 = arith.constant 0 : i32
    %c0_i32_1 = arith.constant 0 : i32
    return %c0_i32, %c0_i32_0 : i32, i32
  }
  func.func @transform_2(%arg0: i32) -> (i32, i32) {
    %c0_i32 = arith.constant 0 : i32
    %c0_i32_0 = arith.constant 0 : i32
    %c0_i32_1 = arith.constant 0 : i32
    return %c0_i32, %c0_i32_0 : i32, i32
  }
  func.func @transform_3(%arg0: i32) -> (i32, i32) {
    %c0_i32 = arith.constant 0 : i32
    %c0_i32_0 = arith.constant 0 : i32
    %c0_i32_1 = arith.constant 0 : i32
    return %c0_i32, %c0_i32_0 : i32, i32
  }
  func.func @transform_4(%arg0: i32) -> (i32, i32) {
    %c0_i32 = arith.constant 0 : i32
    %c0_i32_0 = arith.constant 0 : i32
    %c0_i32_1 = arith.constant 0 : i32
    return %c0_i32, %c0_i32_0 : i32, i32
  }
  func.func @transform_5(%arg0: i32) -> (i32, i32) {
    %c0_i32 = arith.constant 0 : i32
    %c0_i32_0 = arith.constant 0 : i32
    %c0_i32_1 = arith.constant 0 : i32
    return %c0_i32, %c0_i32_0 : i32, i32
  }
  func.func @transform_6(%arg0: i32) -> (i32, i32) {
    %c0_i32 = arith.constant 0 : i32
    %c0_i32_0 = arith.constant 0 : i32
    %c0_i32_1 = arith.constant 0 : i32
    return %c0_i32, %c0_i32_0 : i32, i32
  }
  func.func @transform_7(%arg0: i32) -> (i32, i32) {
    %c0_i32 = arith.constant 0 : i32
    %c0_i32_0 = arith.constant 0 : i32
    return %arg0, %c0_i32 : i32, i32
  }
}

</mosaic_0001>

<llo_original>
// kernel: time_embedding_forward.1
$region0: #{time_embedding_forward.1}
  #allocation0 [shape = 'u32[]', space=smem, size = 0x4, offset = 0x4, fixed_abs, tag = 'smem constant byte address 0x4 - core index']
  #allocation1 [shape = 'u32[144,128]{1,0:T(1,128)}', space=vmem, size = 0x12000, scoped, tag = 'internal scratch']
  %s0 = inlined_call_operand.vmem [shape: f32[8,1], index: 0, kind: input, shape index: {}]
  %s1 = inlined_call_operand.vmem [shape: f32[1,32], index: 1, kind: input, shape index: {}]
  %s2 = inlined_call_operand.vmem [shape: f32[1,32], index: 2, kind: input, shape index: {}]
  %s3 = inlined_call_operand.hbm [shape: f32[32,128], index: 3, kind: input, shape index: {}]
  %s4 = inlined_call_operand.vmem [shape: f32[1,128], index: 4, kind: input, shape index: {}]
  %s5 = inlined_call_operand.hbm [shape: f32[128,128], index: 5, kind: input, shape index: {}]
  %s6 = inlined_call_operand.vmem [shape: f32[1,128], index: 6, kind: input, shape index: {}]
  %s7 = inlined_call_operand.hbm [shape: f32[8,128], index: 7, kind: output, shape index: {}]
  %s8 = sld [smem:[#allocation0]]
  $region46: #{time_embedding_forward.1} parent=0
    _
  %s10 = ssub.s32 1, %s8
  %s11 = scalar_select 0, %s10, %s8
  $region1: #{time_embedding_forward.1} parent=0
    #allocation2 [shape = 'u8[16384]{0}', space=vmem, size = 0x4000, scoped, tag = 'input window, operand 3, single buffered']
    #allocation3 [shape = 's32[1]{0}', space=sflag, size = 0x4, scoped, tag = 'scoped memory for time_embedding_forward.1']
    #allocation4 [shape = 's32[1]{0}', space=sflag, size = 0x4, scoped, tag = 'scoped memory for time_embedding_forward.1']
    #allocation5 [shape = 'u8[65536]{0}', space=vmem, size = 0x10000, scoped, tag = 'input window, operand 5, single buffered']
    #allocation6 [shape = 's32[1]{0}', space=sflag, size = 0x4, scoped, tag = 'scoped memory for time_embedding_forward.1']
    #allocation7 [shape = 'u8[4096]{0}', space=vmem, size = 0x1000, scoped, tag = 'output window, operand 0, single buffered']
    %12 = vsyncpa [#allocation3], 0
    %13 = vsyncpa [#allocation6], 0
    %14 = vsyncpa [#allocation4], 0
    // Predicated region
    $region2: #{time_embedding_forward.1} parent=1 // pred_check
      _
    $region3: #{time_embedding_forward.1} parent=1 // pred_check_branch
      %16 = sbr.rel (0) target = $region5
    $region4: #{time_embedding_forward.1} parent=1 // pred_region
      _
    $region5: #{time_embedding_forward.1} parent=1 // pred_fallthru
      _
    // Predicated region
    $region6: #{time_embedding_forward.1} parent=1 // pred_check
      _
    $region7: #{time_embedding_forward.1} parent=1 // pred_check_branch
      %18 = sbr.rel (0) target = $region9
    $region8: #{time_embedding_forward.1} parent=1 // pred_region
      _
    $region9: #{time_embedding_forward.1} parent=1 // pred_fallthru
      _
    // Predicated region
    $region10: #{time_embedding_forward.1} parent=1 // pred_check
      _
    $region11: #{time_embedding_forward.1} parent=1 // pred_check_branch
      %20 = sbr.rel (0) target = $region13
    $region12: #{time_embedding_forward.1} parent=1 // pred_region
      _
    $region13: #{time_embedding_forward.1} parent=1 // pred_fallthru
      _
    // Predicated region
    $region14: #{time_embedding_forward.1} parent=1 // pred_check
      _
    $region15: #{time_embedding_forward.1} parent=1 // pred_check_branch
      %22 = sbr.rel (0) target = $region17
    $region16: #{time_embedding_forward.1} parent=1 // pred_region
      %s24 = ssub.s32 512, 512
      %25 = vsyncadd [#allocation3], %s24
      %s26 = sshll.u32 [#allocation2], 4
      %s27 = int_to_ptr.vmem [resolvable:$true] %s26
      %32 = dma.hbm_to_vmem [thread:$0]  %s3, 512, %s27, [#allocation3], 128, 128, 8
    $region17: #{time_embedding_forward.1} parent=1 // pred_fallthru
      _
    // Predicated region
    $region18: #{time_embedding_forward.1} parent=1 // pred_check
      _
    $region19: #{time_embedding_forward.1} parent=1 // pred_check_branch
      %34 = sbr.rel (0) target = $region21
    $region20: #{time_embedding_forward.1} parent=1 // pred_region
      _
    $region21: #{time_embedding_forward.1} parent=1 // pred_fallthru
      _
    // Predicated region
    $region22: #{time_embedding_forward.1} parent=1 // pred_check
      _
    $region23: #{time_embedding_forward.1} parent=1 // pred_check_branch
      %36 = sbr.rel (0) target = $region25
    $region24: #{time_embedding_forward.1} parent=1 // pred_region
      %s38 = ssub.s32 2048, 2048
      %39 = vsyncadd [#allocation6], %s38
      %s40 = sshll.u32 [#allocation5], 4
      %s41 = int_to_ptr.vmem [resolvable:$true] %s40
      %46 = dma.hbm_to_vmem [thread:$0]  %s5, 2048, %s41, [#allocation6], 128, 128, 8
    $region25: #{time_embedding_forward.1} parent=1 // pred_fallthru
      _
    // Predicated region
    $region26: #{time_embedding_forward.1} parent=1 // pred_check
      _
    $region27: #{time_embedding_forward.1} parent=1 // pred_check_branch
      %48 = sbr.rel (0) target = $region29
    $region28: #{time_embedding_forward.1} parent=1 // pred_region
      _
    $region29: #{time_embedding_forward.1} parent=1 // pred_fallthru
      _
    // Predicated region
    $region30: #{time_embedding_forward.1} parent=1 // pred_check
      _
    $region31: #{time_embedding_forward.1} parent=1 // pred_check_branch
      %50 = sbr.rel (0) target = $region33
    $region32: #{time_embedding_forward.1} parent=1 // pred_region
      %51 = dma.done [#allocation3], 512
    $region33: #{time_embedding_forward.1} parent=1 // pred_fallthru
      _
    // Predicated region
    $region34: #{time_embedding_forward.1} parent=1 // pred_check
      _
    $region35: #{time_embedding_forward.1} parent=1 // pred_check_branch
      %53 = sbr.rel (0) target = $region37
    $region36: #{time_embedding_forward.1} parent=1 // pred_region
      %54 = dma.done [#allocation6], 2048
    $region37: #{time_embedding_forward.1} parent=1 // pred_fallthru
      _
    %v55 = vld [vmem:[%s0] sm:$0xff]
    %v56 = vld [vmem:[%s1] sm:$0x1]
    %58 = vset.pattern.permute.xlu0 0
    %59 = vperm.xlu0 %58, %v55
    %v60 = vpop.permute.xlu0 %59
    %v63 = vlaneseq
    %v64 = vshrl.u32 %v63, 7
    %v65 = vsub.s32 0, %v64
    %v66 = vrot.slane %v56, %v65
    %v68 = vmul.f32 %v60, %v66
    %v69 = vld [vmem:[%s2] sm:$0x1]
    %v71 = vlaneseq
    %v72 = vshrl.u32 %v71, 7
    %v73 = vsub.s32 0, %v72
    %v74 = vrot.slane %v69, %v73
    %v76 = vadd.f32 %v68, %v74
    %v77 = vand.u32 2147483647, %v76
    %vm78 = vcmp.le.f32.partialorder %v77, 0.7853982
    %vm79 = vcmp.lt.s32.totalorder %v76, 0
    %v80 = vand.u32 %v76, 2139095040
    %v81 = vshrl.u32 %v80, 23
    %v82 = vsub.s32 %v81, 127
    %v83 = vand.u32 2147483647, %v76
    %v84 = vand.u32 %v83, 8388607
    %v85 = vor.u32 %v84, 8388608
    %v86 = vsub.s32 0, %v85
    %v87 = vadd.s32 %v82, 1
    %vm88 = vcmp.gt.s32.totalorder %v87, 0
    %v89 = vsel %vm88, %v87, 0
    %v90 = vshrl.u32 %v89, 5
    %v91 = vand.u32 %v89, 31
    %v92 = vsub.s32 32, %v91
    %v93 = vshrl.u32 683565275, %v92
    %v94 = vshll.u32 683565275, %v91
    %v95 = vshrl.u32 2475754826, %v92
    %v96 = vor.u32 %v94, %v95
    %v97 = vshll.u32 2475754826, %v91
    %v98 = vshrl.u32 2131351028, %v92
    %v99 = vor.u32 %v97, %v98
    %v100 = vshll.u32 2131351028, %v91
    %v101 = vshrl.u32 2102212464, %v92
    %v102 = vor.u32 %v100, %v101
    %v103 = vshll.u32 2102212464, %v91
    %v104 = vshrl.u32 920167782, %v92
    %v105 = vor.u32 %v103, %v104
    %v106 = vshll.u32 920167782, %v91
    %v107 = vshrl.u32 1326507024, %v92
    %v108 = vor.u32 %v106, %v107
    %vm109 = vcmp.lt.s32.totalorder %v90, 1
    %vm110 = vcmp.lt.s32.totalorder %v90, 2
    %vm111 = vcmp.lt.s32.totalorder %v90, 3
    %vm112 = vcmp.lt.s32.totalorder %v90, 4
    %v113 = vsel %vm109, %v93, %v96
    %v114 = vsel %vm112, %v102, 2102212464
    %v115 = vsel %vm111, %v99, %v114
    %v116 = vsel %vm110, %v113, %v115
    %v117 = vsel %vm109, %v96, %v99
    %v118 = vsel %vm112, %v105, 920167782
    %v119 = vsel %vm111, %v102, %v118
    %v120 = vsel %vm110, %v117, %v119
    %v121 = vsel %vm109, %v99, %v102
    %v122 = vsel %vm112, %v108, 1326507024
    %v123 = vsel %vm111, %v105, %v122
    %v124 = vsel %vm110, %v121, %v123
    %v125 = vshll.u32 %v85, 8
    %v126 = vmul.u32.u64.compose %v125, %v124
    %v127 = vextract.low.u32 %v126
    %v128 = vextract.high.u32 %v126
    %v129 = vmul.u32.u64.compose %v125, %v120
    %v130 = vextract.low.u32 %v129
    %v131 = vextract.high.u32 %v129
    %v132 = vmul.u32 %v125, %v116
    %v133 = vadd.s32 %v128, %v130
    %vm134 = vc.u32 %v128, %v130
    %v135 = vadd.s32 %v131, 1
    %v136 = vsel %vm134, %v135, %v131
    %v137 = vadd.s32 %v132, %v136
    %v138 = vadd.s32 %v137, 536870912
    %v139 = vshrl.u32 %v138, 30
    %v140 = vshll.u32 %v139, 30
    %v141 = vsub.s32 %v137, %v140
    %vm142 = vcmp.lt.s32.totalorder %v141, 0
    %v143 = vsub.s32 0, %v141
    %v144 = vsel %vm142, %v143, %v141
    %v145 = vclz %v144
    %v146 = vsub.s32 %v145, 2
    %vm147 = vcmp.gt.s32.totalorder 0, %v146
    %v148 = vsel %vm147, 0, %v146
    %v149 = vsub.s32 32, %v148
    %v150 = vshll.u32 %v141, %v148
    %v151 = vshrl.u32 %v133, %v149
    %v152 = vor.u32 %v150, %v151
    %v153 = vsub.s32 4294967266, %v148
    %v154 = vadd.s32 %v153, 127
    %v155 = vshll.u32 %v154, 23
    %v156 = vor.u32 4788187, %v155
    %v157 = vand.u32 2147483647, %v156
    %v159 = vcvt.s32.f32 %v152
    %v160 = vmul.f32 %v159, %v157
    %v161 = vxor.u32 %v160, 2147483648
    %v162 = vsel %vm79, %v161, %v160
    %v163 = vsub.s32 4, %v139
    %v164 = vsel %vm79, %v163, %v139
    %v165 = vsel %vm78, %v76, %v162
    %v166 = vsel %vm78, 0, %v164
    %v167 = vcosq.f32.pop %v165
    %v168 = vsinq.f32.pop %v165
    %vm169 = vweird.f32 %v76
    %v170 = vadd.s32 %v166, 3
    %v171 = vand.u32 %v170, 3
    %vm172 = vcmp.lt.s32.totalorder %v171, 2
    %vm173 = vcmp.eq.s32.totalorder %v171, 0
    %v174 = vxor.u32 %v168, 2147483648
    %v175 = vsel %vm173, %v167, %v174
    %vm176 = vcmp.eq.s32.totalorder %v171, 2
    %v177 = vxor.u32 %v167, 2147483648
    %v178 = vsel %vm176, %v177, %v168
    %v179 = vsel %vm172, %v175, %v178
    %v180 = vsel %vm169, nan, %v179
    %v181 = vld [vmem:[#allocation2] sm:$0xff]
    %v182 = vld [vmem:[#allocation2 + $0x8] sm:$0xff]
    %v183 = vld [vmem:[#allocation2 + $0x10] sm:$0xff]
    %v184 = vld [vmem:[#allocation2 + $0x18] sm:$0xff]
    %v185 = vld [vmem:[%s4] sm:$0x1]
    %v187 = vlaneseq
    %v188 = vshrl.u32 %v187, 7
    %v189 = vsub.s32 0, %v188
    %v190 = vrot.slane %v185, %v189
    %vm192 = vcmask 261120
    %v194 = vsel %vm192, %v180, 0
    %196 = vmatprep.subr.mxu0 0.0
    %197 = vmatpush1.msra.mxu0 %v181
    %198 = vmatprep.subr.mxu0 0.0
    %199 = vmatpush1.msra.mxu0 %v182
    %200 = vmatprep.subr.mxu0 0.0
    %201 = vmatpush1.msra.mxu0 %v183
    %202 = vmatprep.subr.mxu0 0.0
    %203 = vmatpush1.msra.mxu0 %v184
    %204 = vmatprep.subr.mxu0 0.0
    %205 = vmatpush1.msra.mxu0 0.0
    %206 = vmatprep.subr.mxu0 0.0
    %207 = vmatpush1.msra.mxu0 0.0
    %208 = vmatprep.subr.mxu0 0.0
    %209 = vmatpush1.msra.mxu0 0.0
    %210 = vmatprep.subr.mxu0 0.0
    %211 = vmatpush1.msra.mxu0 0.0
    %212 = vmatprep.subr.mxu0 0.0
    %213 = vmatpush1.msra.mxu0 0.0
    %214 = vmatprep.subr.mxu0 0.0
    %215 = vmatpush1.msra.mxu0 0.0
    %216 = vmatprep.subr.mxu0 0.0
    %217 = vmatpush1.msra.mxu0 0.0
    %218 = vmatprep.subr.mxu0 0.0
    %219 = vmatpush1.msra.mxu0 0.0
    %220 = vmatprep.subr.mxu0 0.0
    %221 = vmatpush1.msra.mxu0 0.0
    %222 = vmatprep.subr.mxu0 0.0
    %223 = vmatpush1.msra.mxu0 0.0
    %224 = vmatprep.subr.mxu0 0.0
    %225 = vmatpush1.msra.mxu0 0.0
    %226 = vmatprep.subr.mxu0 0.0
    %227 = vmatpush1.msra.mxu0 0.0
    %228 = vmatprep.subr.mxu0 0.0
    %229 = vmatpush1.msra.mxu0 0.0
    %230 = vmatprep.subr.mxu0 0.0
    %231 = vmatpush1.msra.mxu0 0.0
    %232 = vmatprep.subr.mxu0 0.0
    %233 = vmatpush1.msra.mxu0 0.0
    %234 = vmatprep.subr.mxu0 0.0
    %235 = vmatpush1.msra.mxu0 0.0
    %236 = vmatprep.subr.mxu0 0.0
    %237 = vmatpush1.msra.mxu0 0.0
    %238 = vmatprep.subr.mxu0 0.0
    %239 = vmatpush1.msra.mxu0 0.0
    %240 = vmatprep.subr.mxu0 0.0
    %241 = vmatpush1.msra.mxu0 0.0
    %242 = vmatprep.subr.mxu0 0.0
    %243 = vmatpush1.msra.mxu0 0.0
    %244 = vmatprep.subr.mxu0 0.0
    %245 = vmatpush1.msra.mxu0 0.0
    %246 = vmatprep.subr.mxu0 0.0
    %247 = vmatpush1.msra.mxu0 0.0
    %248 = vmatprep.subr.mxu0 0.0
    %249 = vmatpush1.msra.mxu0 0.0
    %250 = vmatprep.subr.mxu0 0.0
    %251 = vmatpush1.msra.mxu0 0.0
    %252 = vmatprep.subr.mxu0 0.0
    %253 = vmatpush1.msra.mxu0 0.0
    %254 = vmatprep.subr.mxu0 0.0
    %255 = vmatpush1.msra.mxu0 0.0
    %256 = vmatprep.subr.mxu0 0.0
    %257 = vmatpush1.msra.mxu0 0.0
    %258 = vmatprep.subr.mxu0 0.0
    %259 = vmatpush1.msra.mxu0 0.0
    %260 = vmatprep.mubr.f32.mxu0 0.0
    %261 = vmatmul.mubr.f32.gmra.mrb[0].mxu0 %v194
    %v262 = vpop.f32.mrb[0].mxu0
    %v263 = vadd.f32 %v190, %v262
    %v264 = vpop.f32.mrb[0].mxu0
    %265 = vdwg.mxu0
    %v266 = vmul.f32 %v263, 0.5
    %v267 = vtanh.pop %v266
    %v268 = vadd.f32 %v267, 1.0
    %v269 = vmul.f32 %v266, %v268
    %v270 = vld [vmem:[#allocation5] sm:$0xff]
    %v271 = vld [vmem:[#allocation5 + $0x8] sm:$0xff]
    %v272 = vld [vmem:[#allocation5 + $0x10] sm:$0xff]
    %v273 = vld [vmem:[#allocation5 + $0x18] sm:$0xff]
    %v274 = vld [vmem:[#allocation5 + $0x20] sm:$0xff]
    %v275 = vld [vmem:[#allocation5 + $0x28] sm:$0xff]
    %v276 = vld [vmem:[#allocation5 + $0x30] sm:$0xff]
    %v277 = vld [vmem:[#allocation5 + $0x38] sm:$0xff]
    %v278 = vld [vmem:[#allocation5 + $0x40] sm:$0xff]
    %v279 = vld [vmem:[#allocation5 + $0x48] sm:$0xff]
    %v280 = vld [vmem:[#allocation5 + $0x50] sm:$0xff]
    %v281 = vld [vmem:[#allocation5 + $0x58] sm:$0xff]
    %v282 = vld [vmem:[#allocation5 + $0x60] sm:$0xff]
    %v283 = vld [vmem:[#allocation5 + $0x68] sm:$0xff]
    %v284 = vld [vmem:[#allocation5 + $0x70] sm:$0xff]
    %v285 = vld [vmem:[#allocation5 + $0x78] sm:$0xff]
    %v286 = vld [vmem:[%s6] sm:$0x1]
    %v288 = vlaneseq
    %v289 = vshrl.u32 %v288, 7
    %v290 = vsub.s32 0, %v289
    %v291 = vrot.slane %v286, %v290
    %293 = vmatprep.subr.mxu0 0.0
    %294 = vmatpush1.msra.mxu0 %v270
    %295 = vmatprep.subr.mxu0 0.0
    %296 = vmatpush1.msra.mxu0 %v271
    %297 = vmatprep.subr.mxu0 0.0
    %298 = vmatpush1.msra.mxu0 %v272
    %299 = vmatprep.subr.mxu0 0.0
    %300 = vmatpush1.msra.mxu0 %v273
    %301 = vmatprep.subr.mxu0 0.0
    %302 = vmatpush1.msra.mxu0 %v274
    %303 = vmatprep.subr.mxu0 0.0
    %304 = vmatpush1.msra.mxu0 %v275
    %305 = vmatprep.subr.mxu0 0.0
    %306 = vmatpush1.msra.mxu0 %v276
    %307 = vmatprep.subr.mxu0 0.0
    %308 = vmatpush1.msra.mxu0 %v277
    %309 = vmatprep.subr.mxu0 0.0
    %310 = vmatpush1.msra.mxu0 %v278
    %311 = vmatprep.subr.mxu0 0.0
    %312 = vmatpush1.msra.mxu0 %v279
    %313 = vmatprep.subr.mxu0 0.0
    %314 = vmatpush1.msra.mxu0 %v280
    %315 = vmatprep.subr.mxu0 0.0
    %316 = vmatpush1.msra.mxu0 %v281
    %317 = vmatprep.subr.mxu0 0.0
    %318 = vmatpush1.msra.mxu0 %v282
    %319 = vmatprep.subr.mxu0 0.0
    %320 = vmatpush1.msra.mxu0 %v283
    %321 = vmatprep.subr.mxu0 0.0
    %322 = vmatpush1.msra.mxu0 %v284
    %323 = vmatprep.subr.mxu0 0.0
    %324 = vmatpush1.msra.mxu0 %v285
    %325 = vmatprep.subr.mxu0 0.0
    %326 = vmatpush1.msra.mxu0 0.0
    %327 = vmatprep.subr.mxu0 0.0
    %328 = vmatpush1.msra.mxu0 0.0
    %329 = vmatprep.subr.mxu0 0.0
    %330 = vmatpush1.msra.mxu0 0.0
    %331 = vmatprep.subr.mxu0 0.0
    %332 = vmatpush1.msra.mxu0 0.0
    %333 = vmatprep.subr.mxu0 0.0
    %334 = vmatpush1.msra.mxu0 0.0
    %335 = vmatprep.subr.mxu0 0.0
    %336 = vmatpush1.msra.mxu0 0.0
    %337 = vmatprep.subr.mxu0 0.0
    %338 = vmatpush1.msra.mxu0 0.0
    %339 = vmatprep.subr.mxu0 0.0
    %340 = vmatpush1.msra.mxu0 0.0
    %341 = vmatprep.subr.mxu0 0.0
    %342 = vmatpush1.msra.mxu0 0.0
    %343 = vmatprep.subr.mxu0 0.0
    %344 = vmatpush1.msra.mxu0 0.0
    %345 = vmatprep.subr.mxu0 0.0
    %346 = vmatpush1.msra.mxu0 0.0
    %347 = vmatprep.subr.mxu0 0.0
    %348 = vmatpush1.msra.mxu0 0.0
    %349 = vmatprep.subr.mxu0 0.0
    %350 = vmatpush1.msra.mxu0 0.0
    %351 = vmatprep.subr.mxu0 0.0
    %352 = vmatpush1.msra.mxu0 0.0
    %353 = vmatprep.subr.mxu0 0.0
    %354 = vmatpush1.msra.mxu0 0.0
    %355 = vmatprep.subr.mxu0 0.0
    %356 = vmatpush1.msra.mxu0 0.0
    %357 = vmatprep.mubr.f32.mxu0 0.0
    %358 = vmatmul.mubr.f32.gmra.mrb[0].mxu0 %v269
    %v359 = vpop.f32.mrb[0].mxu0
    %v360 = vadd.f32 %v291, %v359
    %v361 = vpop.f32.mrb[0].mxu0
    %362 = vdwg.mxu0
    %363 = vst [vmem:[#allocation7] sm:$0xff] %v360
    // Predicated region
    $region38: #{time_embedding_forward.1} parent=1 // pred_check
      _
    $region39: #{time_embedding_forward.1} parent=1 // pred_check_branch
      %365 = sbr.rel (0) target = $region41
    $region40: #{time_embedding_forward.1} parent=1 // pred_region
      %s367 = ssub.s32 128, 128
      %368 = vsyncadd [#allocation4], %s367
      %s370 = sshll.u32 [#allocation7], 4
      %s371 = int_to_ptr.vmem [resolvable:$true] %s370
      %373 = dma.vmem_to_hbm [thread:$0]  %s371, 128, %s7, [#allocation4]
    $region41: #{time_embedding_forward.1} parent=1 // pred_fallthru
      _
    // Predicated region
    $region42: #{time_embedding_forward.1} parent=1 // pred_check
      _
    $region43: #{time_embedding_forward.1} parent=1 // pred_check_branch
      %375 = sbr.rel (0) target = $region45
    $region44: #{time_embedding_forward.1} parent=1 // pred_region
      %376 = dma.done [#allocation4], 128
    $region45: #{time_embedding_forward.1} parent=1 // pred_fallthru
      _
    %377 = vsyncpa [#allocation3], 1
    %378 = vsyncpa [#allocation6], 1
    %379 = vsyncpa [#allocation4], 1

</llo_original>
